<compile_context>
chip_gen: v6e
topology: v6e:2x2x1
jax: 0.10.0
libtpu: 0.0.40
codegen_flags: <defaults>
</compile_context>

<pallas_src>
import functools
import math

import numpy as np

import jax
import jax.numpy as jnp
from jax.experimental import pallas as pl
from jax.experimental.pallas import tpu as pltpu


# ----------------------------------------------------------------------------
# Kernel 1: token-tiled linear  y = x @ W^T   (W passed pre-transposed [Din,Dout])
# ----------------------------------------------------------------------------
def _linear_kernel(x_ref, wt_ref, o_ref):
    # Native-dtype operands straight into the MXU, f32 accumulation.
    o_ref[...] = jnp.dot(
        x_ref[...], wt_ref[...], preferred_element_type=jnp.float32
    ).astype(o_ref.dtype)


def linear_pallas(x2d, w, *, tile_t=256):
    """x2d: [T, Din]; w: nn.Linear layout [Dout, Din] -> [T, Dout]."""
    T, Din = x2d.shape
    Dout = w.shape[0]
    wt = w.T  # one-time wrapper-side transpose (layout plumbing)
    tile = min(tile_t, T)
    assert T % tile == 0, "pad tokens to a multiple of the tile in the caller"

    return pl.pallas_call(
        _linear_kernel,
        out_shape=jax.ShapeDtypeStruct((T, Dout), x2d.dtype),
        grid_spec=pltpu.PrefetchScalarGridSpec(
            num_scalar_prefetch=0,
            grid=(T // tile,),
            in_specs=[
                pl.BlockSpec((tile, Din), lambda i: (i, 0)),   # token tile
                pl.BlockSpec((Din, Dout), lambda i: (0, 0)),   # resident weight
            ],
            out_specs=pl.BlockSpec((tile, Dout), lambda i: (i, 0)),
        ),
        compiler_params=pltpu.CompilerParams(
            dimension_semantics=("parallel",),
        ),
    )(x2d, wt)


# ----------------------------------------------------------------------------
# Kernel 2: fused per-batch MLA attention core (absorb path)
# ----------------------------------------------------------------------------
def _mla_attn_kernel(q_nope_ref, q_pe_ref, kv_ref, k_pe_ref, cos_ref, sin_ref,
                     rot_ref, kvw_ref, wb_nope_ref, wb_v_ref, mask_ref,
                     out_ref, kvc_ref, pec_ref, *, softmax_scale, eps):
    f32 = jnp.float32

    q_nope = q_nope_ref[...]                  # (H, S, Dn)  native dtype -> MXU
    q_pe = q_pe_ref[...].astype(f32)          # (H, S, R)   RoPE in f32
    kv = kv_ref[...].astype(f32)              # (S, C)      RMSNorm in f32
    k_pe = k_pe_ref[...].astype(f32)          # (S, R)
    cos = cos_ref[...]                        # (S, R)
    sin = sin_ref[...]                        # (S, R)
    rot = rot_ref[...]                        # (R, R) pair-swap/sign matrix
    kv_w = kvw_ref[...]                       # (1, C)
    wb_nope = wb_nope_ref[...]                # (H, Dn, C)
    wb_v = wb_v_ref[...]                      # (H, Dv, C)
    mask = mask_ref[...]                      # (S, T)

    # --- kv RMSNorm (matches torch: x.float(); x * rsqrt(mean(x^2)+eps) * w) ---
    ms = jnp.mean(kv * kv, axis=-1, keepdims=True)
    kv_n = kv * jax.lax.rsqrt(ms + eps) * kv_w                      # (S, C) f32

    # --- RoPE: interleaved complex rotation as x*cos + (x @ ROT)*sin (MXU) ---
    q_pe_rot = q_pe * cos[None] + jnp.einsum(
        'hsr,rk->hsk', q_pe, rot, preferred_element_type=f32) * sin[None]
    k_pe_rot = k_pe * cos + jnp.dot(
        k_pe, rot, preferred_element_type=f32) * sin                # (S, R) f32

    # --- absorb q_nope through wkv_b (per-head batched matmul) ---
    q_abs = jnp.einsum('hsd,hdc->hsc', q_nope, wb_nope,
                       preferred_element_type=f32)                  # (H, S, C)

    # --- scores + mask, f32 softmax with EUP reciprocal ---
    s = (jnp.einsum('hsc,tc->hst', q_abs, kv_n, preferred_element_type=f32)
         + jnp.einsum('hsr,tr->hst', q_pe_rot, k_pe_rot,
                      preferred_element_type=f32))
    s = s * softmax_scale + mask[None]                              # (H, S, T)

    m = jnp.max(s, axis=-1, keepdims=True)
    e = jnp.exp(s - m)
    l = jnp.sum(e, axis=-1, keepdims=True)
    p = e * pl.reciprocal(l, approx=True)                           # EUP slot
    p = p.astype(out_ref.dtype)                                     # .type_as(x)

    # --- context and value absorption ---
    ctx = jnp.einsum('hst,tc->hsc', p, kv_n, preferred_element_type=f32)
    out = jnp.einsum('hsc,hdc->hsd', ctx, wb_v, preferred_element_type=f32)

    out_ref[...] = out.astype(out_ref.dtype)                        # (H, S, Dv)
    kvc_ref[...] = kv_n                                             # cache rows
    pec_ref[...] = k_pe_rot


def mla_attention(q_nope, q_pe, kv, k_pe, cos_full, sin_full, rot, kv_norm_w,
                  wb_nope, wb_v, mask, *, softmax_scale, eps, out_dtype):
    B, H, S, Dn = q_nope.shape
    R = q_pe.shape[-1]
    C = kv.shape[-1]
    Dv = wb_v.shape[1]
    T = mask.shape[-1]

    kernel = functools.partial(_mla_attn_kernel,
                               softmax_scale=softmax_scale, eps=eps)

    return pl.pallas_call(
        kernel,
        out_shape=(
            jax.ShapeDtypeStruct((B, H, S, Dv), out_dtype),   # attention output
            jax.ShapeDtypeStruct((B, S, C), jnp.float32),     # new kv_cache rows
            jax.ShapeDtypeStruct((B, S, R), jnp.float32),     # new pe_cache rows
        ),
        grid_spec=pltpu.PrefetchScalarGridSpec(
            num_scalar_prefetch=0,
            grid=(B,),
            in_specs=[
                pl.BlockSpec((None, H, S, Dn), lambda b: (b, 0, 0, 0)),
                pl.BlockSpec((None, H, S, R), lambda b: (b, 0, 0, 0)),
                pl.BlockSpec((None, S, C), lambda b: (b, 0, 0)),
                pl.BlockSpec((None, S, R), lambda b: (b, 0, 0)),
                pl.BlockSpec((S, R), lambda b: (0, 0)),
                pl.BlockSpec((S, R), lambda b: (0, 0)),
                pl.BlockSpec((R, R), lambda b: (0, 0)),
                pl.BlockSpec((1, C), lambda b: (0, 0)),
                pl.BlockSpec((H, Dn, C), lambda b: (0, 0, 0)),
                pl.BlockSpec((H, Dv, C), lambda b: (0, 0, 0)),
                pl.BlockSpec((S, T), lambda b: (0, 0)),
            ],
            out_specs=[
                pl.BlockSpec((None, H, S, Dv), lambda b: (b, 0, 0, 0)),
                pl.BlockSpec((None, S, C), lambda b: (b, 0, 0)),
                pl.BlockSpec((None, S, R), lambda b: (b, 0, 0)),
            ],
        ),
        compiler_params=pltpu.CompilerParams(
            dimension_semantics=("parallel",),
        ),
    )(q_nope, q_pe, kv, k_pe, cos_full, sin_full, rot, kv_norm_w,
      wb_nope, wb_v, mask)


# ----------------------------------------------------------------------------
# Wrapper: full MLA forward (prefill, start_pos = 0, q_lora_rank = 0)
# ----------------------------------------------------------------------------
def _rope_rot_matrix(r):
    """(R, R) matrix P with (x @ P)[2i] = -x[2i+1], (x @ P)[2i+1] = x[2i]."""
    m = np.zeros((r, r), dtype=np.float32)
    idx = np.arange(0, r, 2)
    m[idx + 1, idx] = -1.0
    m[idx, idx + 1] = 1.0
    return jnp.asarray(m)


def mla_forward(x, wq_w, wkv_a_w, wkv_b_w, wo_w, kv_norm_w, cos, sin, mask, *,
                n_heads, qk_nope_head_dim, qk_rope_head_dim, v_head_dim,
                kv_lora_rank, softmax_scale, eps=1e-6, tile_t=256):
    B, S, dim = x.shape
    H, Dn, R = n_heads, qk_nope_head_dim, qk_rope_head_dim
    Dv, C = v_head_dim, kv_lora_rank

    x2d = x.reshape(B * S, dim)

    # --- projections (Pallas matmuls) ---
    q = linear_pallas(x2d, wq_w, tile_t=tile_t).reshape(B, S, H, Dn + R)
    kv_a = linear_pallas(x2d, wkv_a_w, tile_t=tile_t).reshape(B, S, C + R)

    # --- wrapper-side layout plumbing (head-major for the attention kernel) ---
    q_nope = jnp.transpose(q[..., :Dn], (0, 2, 1, 3))       # (B, H, S, Dn)
    q_pe = jnp.transpose(q[..., Dn:], (0, 2, 1, 3))         # (B, H, S, R)
    kv = kv_a[..., :C]                                      # (B, S, C)
    k_pe = kv_a[..., C:]                                    # (B, S, R)

    cos_full = jnp.repeat(cos, 2, axis=-1)                  # (S, R) interleaved
    sin_full = jnp.repeat(sin, 2, axis=-1)
    rot = _rope_rot_matrix(R)

    wkv_b = wkv_b_w.reshape(H, Dn + Dv, C)
    wb_nope = wkv_b[:, :Dn, :]
    wb_v = wkv_b[:, Dn:, :]

    attn, kv_cache_new, pe_cache_new = mla_attention(
        q_nope, q_pe, kv, k_pe, cos_full, sin_full, rot,
        kv_norm_w.reshape(1, C), wb_nope, wb_v, mask,
        softmax_scale=softmax_scale, eps=eps, out_dtype=x.dtype)

    # --- output projection ---
    attn2d = jnp.transpose(attn, (0, 2, 1, 3)).reshape(B * S, H * Dv)
    y = linear_pallas(attn2d, wo_w, tile_t=tile_t).reshape(B, S, dim)
    return y, kv_cache_new, pe_cache_new


# ----------------------------------------------------------------------------
# Pure-JAX reference (mirrors the torch forward, absorb branch)
# ----------------------------------------------------------------------------
def mla_reference(x, wq_w, wkv_a_w, wkv_b_w, wo_w, kv_norm_w, cos, sin, mask, *,
                  n_heads, qk_nope_head_dim, qk_rope_head_dim, v_head_dim,
                  kv_lora_rank, softmax_scale, eps=1e-6):
    B, S, dim = x.shape
    H, Dn, R = n_heads, qk_nope_head_dim, qk_rope_head_dim
    Dv, C = v_head_dim, kv_lora_rank

    def rope(t):
        tr = t.astype(jnp.float32).reshape(*t.shape[:-1], -1, 2)
        tc = jax.lax.complex(tr[..., 0], tr[..., 1])
        cis = jax.lax.complex(cos, sin).reshape(1, cos.shape[0], 1, cos.shape[1])
        y = tc * cis
        return jnp.stack([jnp.real(y), jnp.imag(y)], axis=-1).reshape(t.shape
                                                                      ).astype(t.dtype)

    q = (x @ wq_w.T).reshape(B, S, H, Dn + R)
    q_nope, q_pe = q[..., :Dn], q[..., Dn:]
    q_pe = rope(q_pe)

    kv_a = x @ wkv_a_w.T
    kv, k_pe = kv_a[..., :C], kv_a[..., C:]
    k_pe = rope(k_pe[:, :, None, :]).astype(jnp.float32)

    wkv_b = wkv_b_w.reshape(H, Dn + Dv, C)
    q_abs = jnp.einsum('bshd,hdc->bshc', q_nope, wkv_b[:, :Dn])

    kvf = kv.astype(jnp.float32)
    kv_n = kvf * jax.lax.rsqrt(jnp.mean(kvf * kvf, -1, keepdims=True) + eps) * kv_norm_w
    pe = k_pe[:, :, 0, :]

    scores = (jnp.einsum('bshc,btc->bsht', q_abs, kv_n)
              + jnp.einsum('bshr,btr->bsht', q_pe, pe)) * softmax_scale
    scores = scores + mask[:, None, :]
    p = jax.nn.softmax(scores.astype(jnp.float32), axis=-1).astype(x.dtype)

    ctx = jnp.einsum('bsht,btc->bshc', p, kv_n)
    out = jnp.einsum('bshc,hdc->bshd', ctx, wkv_b[:, Dn:])
    y = out.reshape(B, S, H * Dv) @ wo_w.T
    return y, kv_n, pe


# ----------------------------------------------------------------------------
if __name__ == "__main__":
    # Small shapes consistent with the module's forward (prefill, start_pos=0).
    B, S, dim = 2, 8, 64
    n_heads = 4
    kv_lora_rank = 16
    qk_nope_head_dim = 16
    qk_rope_head_dim = 16
    v_head_dim = 16
    qk_head_dim = qk_nope_head_dim + qk_rope_head_dim
    rope_theta = 1000.0
    rope_factor, mscale_arg = 40.0, 1.0
    max_seq_len, original_seq_len = 10000, 196
    start_pos = 0

    softmax_scale = qk_head_dim ** (-0.5)
    if max_seq_len > original_seq_len:
        ms = 0.1 * mscale_arg * math.log(rope_factor) + 1.0
        softmax_scale = softmax_scale * ms * ms

    key = jax.random.PRNGKey(0)
    ks = jax.random.split(key, 6)
    x = jax.random.normal(ks[0], (B, S, dim), jnp.float32)
    wq_w = 0.05 * jax.random.normal(ks[1], (n_heads * qk_head_dim, dim), jnp.float32)
    wkv_a_w = 0.05 * jax.random.normal(ks[2], (kv_lora_rank + qk_rope_head_dim, dim),
                                       jnp.float32)
    wkv_b_w = 0.05 * jax.random.normal(
        ks[3], (n_heads * (qk_nope_head_dim + v_head_dim), kv_lora_rank), jnp.float32)
    wo_w = 0.05 * jax.random.normal(ks[4], (dim, n_heads * v_head_dim), jnp.float32)
    kv_norm_w = 1.0 + 0.1 * jax.random.normal(ks[5], (kv_lora_rank,), jnp.float32)

    # freqs_cis as cos/sin, shape (S, R//2)
    pos = jnp.arange(start_pos, start_pos + S, dtype=jnp.float32)
    inv_freq = 1.0 / (rope_theta ** (
        jnp.arange(0, qk_rope_head_dim, 2, dtype=jnp.float32) / qk_rope_head_dim))
    angles = pos[:, None] * inv_freq[None, :]
    cos, sin = jnp.cos(angles), jnp.sin(angles)

    # causal mask (S, S), same as torch.full(...).triu_(1)
    mask = jnp.where(jnp.arange(S)[None, :] > jnp.arange(S)[:, None],
                     -jnp.inf, 0.0).astype(jnp.float32)

    hp = dict(n_heads=n_heads, qk_nope_head_dim=qk_nope_head_dim,
              qk_rope_head_dim=qk_rope_head_dim, v_head_dim=v_head_dim,
              kv_lora_rank=kv_lora_rank, softmax_scale=softmax_scale)

    y, kv_cache_new, pe_cache_new = mla_forward(
        x, wq_w, wkv_a_w, wkv_b_w, wo_w, kv_norm_w, cos, sin, mask, **hp)
    jax.block_until_ready((y, kv_cache_new, pe_cache_new))

    y_ref, kv_ref, pe_ref = mla_reference(
        x, wq_w, wkv_a_w, wkv_b_w, wo_w, kv_norm_w, cos, sin, mask, **hp)

    assert jnp.allclose(y, y_ref, atol=3e-3, rtol=3e-3), "MLA output mismatch"
    assert jnp.allclose(kv_cache_new, kv_ref, atol=3e-3, rtol=3e-3), "kv_cache mismatch"
    assert jnp.allclose(pe_cache_new, pe_ref, atol=3e-3, rtol=3e-3), "pe_cache mismatch"

    print("KERNEL_OK")
</pallas_src>

<mosaic_0001>
module attributes {stable_mosaic.version = 11 : i64} {
  func.func @_linear_kernel(%arg0: i32, %arg1: memref<16x64xf32, #tpu.memory_space<vmem>>, %arg2: memref<64x128xf32, #tpu.memory_space<vmem>>, %arg3: memref<16x128xf32, #tpu.memory_space<vmem>>) attributes {dimension_semantics = [#tpu.dimension_semantics<parallel>], iteration_bounds = array<i64: 1>, scalar_prefetch = 0 : i64, scratch_operands = 0 : i64, tpu.core_type = #tpu.core_type<tc>, window_params = [{transform_indices = @transform_0, window_bounds = array<i64: 16, 64>}, {pipeline_mode = #tpu.pipeline_mode<synchronous>, transform_indices = @transform_1, window_bounds = array<i64: 64, 128>}, {transform_indices = @transform_2, window_bounds = array<i64: 16, 128>}]} {
    %c0 = arith.constant 0 : index
    %c0_0 = arith.constant 0 : index
    %0 = vector.load %arg1[%c0, %c0_0] : memref<16x64xf32, #tpu.memory_space<vmem>>, vector<16x64xf32>
    %c0_1 = arith.constant 0 : index
    %c0_2 = arith.constant 0 : index
    %1 = vector.load %arg2[%c0_1, %c0_2] : memref<64x128xf32, #tpu.memory_space<vmem>>, vector<64x128xf32>
    %cst = arith.constant dense<0.000000e+00> : vector<16x128xf32>
    %2 = tpu.matmul %0, %1, %cst {dimension_numbers = #tpu.dot_dimension_numbers<[1], [0], [0], [1], [0, 0, 1, 1], [], []>} : vector<16x64xf32>, vector<64x128xf32>, vector<16x128xf32> -> vector<16x128xf32>
    %c0_3 = arith.constant 0 : index
    %c0_4 = arith.constant 0 : index
    %3 = vector.load %arg3[%c0_3, %c0_4] : memref<16x128xf32, #tpu.memory_space<vmem>>, vector<16x128xf32>
    tpu.vector_store %arg3[%c0_3, %c0_4], %2 {strides = array<i32>} : memref<16x128xf32, #tpu.memory_space<vmem>>, vector<16x128xf32>,
    return
  }
  func.func @transform_0(%arg0: i32) -> (i32, i32) {
    %c0_i32 = arith.constant 0 : i32
    %c0_i32_0 = arith.constant 0 : i32
    return %arg0, %c0_i32 : i32, i32
  }
  func.func @transform_1(%arg0: i32) -> (i32, i32) {
    %c0_i32 = arith.constant 0 : i32
    %c0_i32_0 = arith.constant 0 : i32
    %c0_i32_1 = arith.constant 0 : i32
    return %c0_i32, %c0_i32_0 : i32, i32
  }
  func.func @transform_2(%arg0: i32) -> (i32, i32) {
    %c0_i32 = arith.constant 0 : i32
    %c0_i32_0 = arith.constant 0 : i32
    return %arg0, %c0_i32 : i32, i32
  }
}

</mosaic_0001>

<llo_original>
// kernel: tpu_custom_call.1
$region0: #{tpu_custom_call.1}
  #allocation0 [shape = 'u32[]', space=smem, size = 0x4, offset = 0x4, fixed_abs, tag = 'smem constant byte address 0x4 - core index']
  #allocation1 [shape = 'u32[144,128]{1,0:T(1,128)}', space=vmem, size = 0x12000, scoped, tag = 'internal scratch']
  %s0 = inlined_call_operand.hbm [shape: f32[16,64], index: 0, kind: input, shape index: {}]
  %s1 = inlined_call_operand.hbm [shape: f32[64,128], index: 1, kind: input, shape index: {}]
  %s2 = inlined_call_operand.hbm [shape: f32[16,128], index: 2, kind: output, shape index: {}]
  %s3 = sld [smem:[#allocation0]]
  $region26: #{tpu_custom_call.1} parent=0
    _
  %s5 = ssub.s32 1, %s3
  %s6 = scalar_select 0, %s5, %s3
  $region1: #{tpu_custom_call.1} parent=0
    #allocation2 [shape = 'u8[8192]{0}', space=vmem, size = 0x2000, scoped, tag = 'input window, operand 0, single buffered']
    #allocation3 [shape = 's32[1]{0}', space=sflag, size = 0x4, scoped, tag = 'scoped memory for tpu_custom_call.1']
    #allocation4 [shape = 's32[1]{0}', space=sflag, size = 0x4, scoped, tag = 'scoped memory for tpu_custom_call.1']
    #allocation5 [shape = 'u8[32768]{0}', space=vmem, size = 0x8000, scoped, tag = 'input window, operand 1, single buffered']
    #allocation6 [shape = 's32[1]{0}', space=sflag, size = 0x4, scoped, tag = 'scoped memory for tpu_custom_call.1']
    #allocation7 [shape = 'u8[8192]{0}', space=vmem, size = 0x2000, scoped, tag = 'output window, operand 0, single buffered']
    %7 = vsyncpa [#allocation3], 0
    %8 = vsyncpa [#allocation6], 0
    %9 = vsyncpa [#allocation4], 0
    // Predicated region
    $region2: #{tpu_custom_call.1} parent=1 // pred_check
      _
    $region3: #{tpu_custom_call.1} parent=1 // pred_check_branch
      %11 = sbr.rel (0) target = $region5
    $region4: #{tpu_custom_call.1} parent=1 // pred_region
      %s13 = ssub.s32 256, 256
      %14 = vsyncadd [#allocation3], %s13
      %s15 = sshll.u32 [#allocation2], 4
      %s16 = int_to_ptr.vmem [resolvable:$true] %s15
      %21 = dma.hbm_to_vmem [thread:$0]  %s0, 256, %s16, [#allocation3], 128, 128, 8
    $region5: #{tpu_custom_call.1} parent=1 // pred_fallthru
      _
    // Predicated region
    $region6: #{tpu_custom_call.1} parent=1 // pred_check
      _
    $region7: #{tpu_custom_call.1} parent=1 // pred_check_branch
      %23 = sbr.rel (0) target = $region9
    $region8: #{tpu_custom_call.1} parent=1 // pred_region
      %s25 = ssub.s32 1024, 1024
      %26 = vsyncadd [#allocation6], %s25
      %s27 = sshll.u32 [#allocation5], 4
      %s28 = int_to_ptr.vmem [resolvable:$true] %s27
      %33 = dma.hbm_to_vmem [thread:$0]  %s1, 1024, %s28, [#allocation6], 128, 128, 8
    $region9: #{tpu_custom_call.1} parent=1 // pred_fallthru
      _
    // Predicated region
    $region10: #{tpu_custom_call.1} parent=1 // pred_check
      _
    $region11: #{tpu_custom_call.1} parent=1 // pred_check_branch
      %35 = sbr.rel (0) target = $region13
    $region12: #{tpu_custom_call.1} parent=1 // pred_region
      %36 = dma.done [#allocation3], 256
    $region13: #{tpu_custom_call.1} parent=1 // pred_fallthru
      _
    // Predicated region
    $region14: #{tpu_custom_call.1} parent=1 // pred_check
      _
    $region15: #{tpu_custom_call.1} parent=1 // pred_check_branch
      %38 = sbr.rel (0) target = $region17
    $region16: #{tpu_custom_call.1} parent=1 // pred_region
      %39 = dma.done [#allocation6], 1024
    $region17: #{tpu_custom_call.1} parent=1 // pred_fallthru
      _
    %v40 = vld [vmem:[#allocation2] sm:$0xff]
    %v41 = vld [vmem:[#allocation2 + $0x8] sm:$0xff]
    %v42 = vld [vmem:[#allocation5] sm:$0xff]
    %v43 = vld [vmem:[#allocation5 + $0x8] sm:$0xff]
    %v44 = vld [vmem:[#allocation5 + $0x10] sm:$0xff]
    %v45 = vld [vmem:[#allocation5 + $0x18] sm:$0xff]
    %v46 = vld [vmem:[#allocation5 + $0x20] sm:$0xff]
    %v47 = vld [vmem:[#allocation5 + $0x28] sm:$0xff]
    %v48 = vld [vmem:[#allocation5 + $0x30] sm:$0xff]
    %v49 = vld [vmem:[#allocation5 + $0x38] sm:$0xff]
    %vm50 = vcmask 523264
    %v52 = vsel %vm50, %v40, 0
    %v55 = vsel %vm50, %v41, 0
    %57 = vmatprep.subr.mxu0 0.0
    %58 = vmatpush1.msra.mxu0 0.0
    %59 = vmatprep.subr.mxu0 0.0
    %60 = vmatpush1.msra.mxu0 0.0
    %61 = vmatprep.subr.mxu0 0.0
    %62 = vmatpush1.msra.mxu0 0.0
    %63 = vmatprep.subr.mxu0 0.0
    %64 = vmatpush1.msra.mxu0 0.0
    %65 = vmatprep.subr.mxu0 0.0
    %66 = vmatpush1.msra.mxu0 0.0
    %67 = vmatprep.subr.mxu0 0.0
    %68 = vmatpush1.msra.mxu0 0.0
    %69 = vmatprep.subr.mxu0 0.0
    %70 = vmatpush1.msra.mxu0 0.0
    %71 = vmatprep.subr.mxu0 0.0
    %72 = vmatpush1.msra.mxu0 0.0
    %73 = vmatprep.subr.mxu0 0.0
    %74 = vmatpush1.msra.mxu0 %v49
    %75 = vmatprep.subr.mxu0 0.0
    %76 = vmatpush1.msra.mxu0 %v48
    %77 = vmatprep.subr.mxu0 0.0
    %78 = vmatpush1.msra.mxu0 %v47
    %79 = vmatprep.subr.mxu0 0.0
    %80 = vmatpush1.msra.mxu0 %v46
    %81 = vmatprep.subr.mxu0 0.0
    %82 = vmatpush1.msra.mxu0 %v45
    %83 = vmatprep.subr.mxu0 0.0
    %84 = vmatpush1.msra.mxu0 %v44
    %85 = vmatprep.subr.mxu0 0.0
    %86 = vmatpush1.msra.mxu0 %v43
    %87 = vmatprep.subr.mxu0 0.0
    %88 = vmatpush1.msra.mxu0 %v42
    %89 = vmatprep.subr.mxu0 0.0
    %90 = vmatpush2.msra.mxu0 0.0
    %91 = vmatprep.subr.mxu0 0.0
    %92 = vmatpush2.msra.mxu0 0.0
    %93 = vmatprep.subr.mxu0 0.0
    %94 = vmatpush2.msra.mxu0 0.0
    %95 = vmatprep.subr.mxu0 0.0
    %96 = vmatpush2.msra.mxu0 0.0
    %97 = vmatprep.subr.mxu0 0.0
    %98 = vmatpush2.msra.mxu0 0.0
    %99 = vmatprep.subr.mxu0 0.0
    %100 = vmatpush2.msra.mxu0 0.0
    %101 = vmatprep.subr.mxu0 0.0
    %102 = vmatpush2.msra.mxu0 0.0
    %103 = vmatprep.subr.mxu0 0.0
    %104 = vmatpush2.msra.mxu0 0.0
    %105 = vmatprep.subr.mxu0 0.0
    %106 = vmatpush2.msra.mxu0 0.0
    %107 = vmatprep.subr.mxu0 0.0
    %108 = vmatpush2.msra.mxu0 0.0
    %109 = vmatprep.subr.mxu0 0.0
    %110 = vmatpush2.msra.mxu0 0.0
    %111 = vmatprep.subr.mxu0 0.0
    %112 = vmatpush2.msra.mxu0 0.0
    %113 = vmatprep.subr.mxu0 0.0
    %114 = vmatpush2.msra.mxu0 0.0
    %115 = vmatprep.subr.mxu0 0.0
    %116 = vmatpush2.msra.mxu0 0.0
    %117 = vmatprep.subr.mxu0 0.0
    %118 = vmatpush2.msra.mxu0 0.0
    %119 = vmatprep.subr.mxu0 0.0
    %120 = vmatpush2.msra.mxu0 0.0
    %121 = vmatprep.mubr.f32.mxu0 0.0
    %122 = vmatmul.mubr.f32.gmra.mxu0 %v52
    %v123 = vpop.f32.mrf.mxu0
    %v124 = vadd.f32 0.0, %v123
    %v125 = vpop.f32.mrf.mxu0
    %126 = vmatprep.mubr.f32.mxu0 0.0
    %127 = vmatmul.mubr.f32.gmra.mxu0 %v55
    %v128 = vpop.f32.mrf.mxu0
    %v129 = vadd.f32 0.0, %v128
    %v130 = vpop.f32.mrf.mxu0
    %131 = vdwg.mxu0
    %132 = vst [vmem:[#allocation7] sm:$0xff] %v124
    %133 = vst [vmem:[#allocation7 + $0x8] sm:$0xff] %v129
    // Predicated region
    $region18: #{tpu_custom_call.1} parent=1 // pred_check
      _
    $region19: #{tpu_custom_call.1} parent=1 // pred_check_branch
      %135 = sbr.rel (0) target = $region21
    $region20: #{tpu_custom_call.1} parent=1 // pred_region
      %s137 = ssub.s32 256, 256
      %138 = vsyncadd [#allocation4], %s137
      %s139 = sshll.u32 [#allocation7], 4
      %s140 = int_to_ptr.vmem [resolvable:$true] %s139
      %145 = dma.vmem_to_hbm [thread:$0]  %s140, 256, %s2, [#allocation4], 128, 128, 8
    $region21: #{tpu_custom_call.1} parent=1 // pred_fallthru
      _
    // Predicated region
    $region22: #{tpu_custom_call.1} parent=1 // pred_check
      _
    $region23: #{tpu_custom_call.1} parent=1 // pred_check_branch
      %147 = sbr.rel (0) target = $region25
    $region24: #{tpu_custom_call.1} parent=1 // pred_region
      %148 = dma.done [#allocation4], 256
    $region25: #{tpu_custom_call.1} parent=1 // pred_fallthru
      _
    %149 = vsyncpa [#allocation3], 1
    %150 = vsyncpa [#allocation6], 1
    %151 = vsyncpa [#allocation4], 1

</llo_original>
